<compile_context>
chip_gen: v7x
topology: tpu7x:2x2x1
jax: 0.10.0
libtpu: 0.0.40
codegen_flags: <defaults>
</compile_context>

<pallas_src>
import jax
import jax.numpy as jnp
import numpy as np
from jax.experimental import pallas as pl
from jax.experimental.pallas import tpu as pltpu


def softmax_agent_kernel(x_ref, w_ref, b_ref, out_ref):
    A = w_ref.shape[1]

    # cat(x, x, dim=1) @ W == x @ (W[:F] + W[F:]); the folding is done in the
    # wrapper, so a single MXU matmul (f32 accumulation) suffices.
    logits = (jnp.dot(x_ref[...], w_ref[...], preferred_element_type=jnp.float32)
              + b_ref[...])                                        # [TB, A] f32

    # Row-wise numerically stable softmax.
    m = jnp.max(logits, axis=1, keepdims=True)                     # [TB, 1]
    e = jnp.exp(logits - m)                                        # [TB, A]
    s = jnp.sum(e, axis=1, keepdims=True)                          # [TB, 1]
    # Exact reciprocal (VALU path); approx=True (EUP) would cost ~2e-4 rel err.
    p = e * pl.reciprocal(s)                                       # [TB, A]

    # Exploit path: per-row argmax (first occurrence on ties).
    lane = jax.lax.broadcasted_iota(jnp.int32, logits.shape, 1)
    action = jnp.min(jnp.where(logits >= m, lane, A), axis=1, keepdims=True)

    # Closed forms sharing one log(s):
    #   logp[argmax] = (logits[argmax] - m) - log(s) = -log(s)
    #     -> -log_prob(action) = log(s)
    #   entropy = -sum(p * logp) = log(s) - sum(p * (logits - m))
    log_s = jnp.log(s)                                             # [TB, 1]
    entropy = log_s - jnp.sum(p * (logits - m), axis=1, keepdims=True)

    # Pack everything into one lane-dense slab (single unmasked output DMA per
    # grid step):  [:, 0:A] probs, [:, A] action, [:, A+1] -log_prob,
    # [:, A+2] entropy, remaining lanes zero padding.
    out_ref[...] = jnp.zeros_like(out_ref)           # full-width store (padding)
    out_ref[:, 0:A] = p
    out_ref[:, A:A + 1] = action.astype(jnp.float32)
    out_ref[:, A + 1:A + 2] = log_s
    out_ref[:, A + 2:A + 3] = entropy


def softmax_agent_forward(x, w, b, *, block_b=None):
    """Batched exploit-path forward of Softmax_Agent.

    x: [B, F] f32 (B states, each processed like one module forward call),
    w: [2F, A] f32 (Linear(2F -> A) weight in [in, out] layout), b: [1, A] f32.

    Returns:
      probs  [B, A] f32
      action [B, 1] int32
      stats  [B, 2] f32  -- stats[:, 0] = -log_prob(action), stats[:, 1] = entropy
    """
    B, F = x.shape
    A = w.shape[1]
    assert w.shape[0] == 2 * F

    # Fold cat(x, x) @ W == x @ (W[:F] + W[F:]) once.
    w_folded = w[:F, :] + w[F:, :]

    # Lane-dense output slab width (multiple of 128 lanes -> unmasked DMA).
    LANE = max(128, -(-(A + 3) // 128) * 128)

    if block_b is None:
        if B % 8 != 0:
            block_b = B                              # single step; block == full array
        else:
            per_row_bytes = 2 * (F + LANE) * 4       # double-buffered x tile + out slab
            vmem_budget = 24 << 20                   # fits v7x 32 MiB scoped default
            block_b = min(B, 1024, max(8, vmem_budget // per_row_bytes))
            if B >= 16:
                block_b = min(block_b, B // 2)       # >= 2 grid steps -> both v7x TCs
            block_b = max(8, (block_b // 8) * 8)
            while B % block_b != 0:                  # terminates at 8 (B % 8 == 0)
                block_b -= 8
    assert block_b == B or (block_b % 8 == 0 and B % block_b == 0), \
        "block_b must be sublane-aligned and divide B"

    grid = (B // block_b,)

    vmem_needed = (2 * block_b * (F + LANE) * 4      # x in + slab out, double-buffered
                   + 2 * (F * A + A) * 4             # resident weight + bias
                   + (1 << 20))                      # headroom
    vmem_limit = int(min(max(vmem_needed, 4 << 20), 32 << 20))

    slab = pl.pallas_call(
        softmax_agent_kernel,
        out_shape=jax.ShapeDtypeStruct((B, LANE), jnp.float32),
        grid=grid,
        in_specs=[
            pl.BlockSpec((block_b, F), lambda i: (i, 0)),   # x tile
            pl.BlockSpec((F, A), lambda i: (0, 0)),         # folded weight (invariant)
            pl.BlockSpec((1, A), lambda i: (0, 0)),         # bias (invariant)
        ],
        out_specs=pl.BlockSpec((block_b, LANE), lambda i: (i, 0)),
        compiler_params=pltpu.CompilerParams(
            dimension_semantics=("parallel",),       # shards batch across TCs on v7x
            vmem_limit_bytes=vmem_limit),
    )(x, w_folded, b)

    probs = slab[:, :A]
    action = slab[:, A].astype(jnp.int32)[:, None]
    stats = slab[:, A + 1:A + 3]   # [:, 0] = -log_prob(action), [:, 1] = entropy
    return probs, action, stats


if __name__ == "__main__":
    key = jax.random.PRNGKey(0)
    kx, kw, kb = jax.random.split(key, 3)

    B, F, A = 256, 32, 8            # batch of states, features, action count
    x = jax.random.normal(kx, (B, F), dtype=jnp.float32)
    # Deterministic synthetic "model": Linear(2F -> A).
    w = jax.random.normal(kw, (2 * F, A), dtype=jnp.float32) * 0.1
    b = jax.random.normal(kb, (1, A), dtype=jnp.float32) * 0.1

    probs, action, stats = softmax_agent_forward(x, w, b)
    jax.block_until_ready((probs, action, stats))

    # Pure-JAX reference of the same deterministic (exploit) forward path.
    xx = jnp.concatenate([x, x], axis=1)
    ref_logits = xx @ w + b
    ref_p = jax.nn.softmax(ref_logits, axis=1)
    ref_logp = jax.nn.log_softmax(ref_logits, axis=1)
    ref_action = jnp.argmax(ref_logits, axis=1)
    ref_nll = -jnp.take_along_axis(ref_logp, ref_action[:, None], axis=1)   # [B, 1]
    ref_ent = -jnp.sum(ref_p * ref_logp, axis=1, keepdims=True)             # [B, 1]

    assert np.allclose(np.asarray(probs), np.asarray(ref_p), atol=1e-5)
    assert np.array_equal(np.asarray(action)[:, 0], np.asarray(ref_action))
    assert np.allclose(np.asarray(stats)[:, 0:1], np.asarray(ref_nll), atol=1e-5)
    assert np.allclose(np.asarray(stats)[:, 1:2], np.asarray(ref_ent), atol=1e-5)

    print("KERNEL_OK")
</pallas_src>

<mosaic_0001>
module attributes {stable_mosaic.version = 11 : i64} {
  func.func @softmax_agent_kernel(%arg0: i32, %arg1: memref<128x32xf32, #tpu.memory_space<vmem>>, %arg2: memref<32x8xf32, #tpu.memory_space<vmem>>, %arg3: memref<1x8xf32, #tpu.memory_space<vmem>>, %arg4: memref<128x128xf32, #tpu.memory_space<vmem>>) attributes {dimension_semantics = [#tpu.dimension_semantics<parallel>], iteration_bounds = array<i64: 2>, scalar_prefetch = 0 : i64, scratch_operands = 0 : i64, tpu.core_type = #tpu.core_type<tc>, window_params = [{transform_indices = @transform_0, window_bounds = array<i64: 128, 32>}, {pipeline_mode = #tpu.pipeline_mode<synchronous>, transform_indices = @transform_1, window_bounds = array<i64: 32, 8>}, {pipeline_mode = #tpu.pipeline_mode<synchronous>, transform_indices = @transform_2, window_bounds = array<i64: 1, 8>}, {transform_indices = @transform_3, window_bounds = array<i64: 128, 128>}]} {
    %c0 = arith.constant 0 : index
    %c0_0 = arith.constant 0 : index
    %0 = vector.load %arg1[%c0, %c0_0] : memref<128x32xf32, #tpu.memory_space<vmem>>, vector<128x32xf32>
    %c0_1 = arith.constant 0 : index
    %c0_2 = arith.constant 0 : index
    %1 = vector.load %arg2[%c0_1, %c0_2] : memref<32x8xf32, #tpu.memory_space<vmem>>, vector<32x8xf32>
    %cst = arith.constant dense<0.000000e+00> : vector<128x8xf32>
    %2 = tpu.matmul %0, %1, %cst {dimension_numbers = #tpu.dot_dimension_numbers<[1], [0], [0], [1], [0, 0, 1, 1], [], []>} : vector<128x32xf32>, vector<32x8xf32>, vector<128x8xf32> -> vector<128x8xf32>
    %c0_3 = arith.constant 0 : index
    %c0_4 = arith.constant 0 : index
    %3 = vector.load %arg3[%c0_3, %c0_4] : memref<1x8xf32, #tpu.memory_space<vmem>>, vector<1x8xf32>
    %4 = vector.broadcast %3 : vector<1x8xf32> to vector<128x8xf32>
    %5 = arith.addf %2, %4 : vector<128x8xf32>
    %cst_5 = arith.constant dense<0xFF800000> : vector<128xf32>
    %6 = vector.multi_reduction <maximumf>, %5, %cst_5 [1] : vector<128x8xf32> to vector<128xf32>
    %7 = vector.shape_cast %6 : vector<128xf32> to vector<128x1xf32>
    %8 = vector.broadcast %7 : vector<128x1xf32> to vector<128x8xf32>
    %9 = arith.subf %5, %8 : vector<128x8xf32>
    %10 = math.exp %9 : vector<128x8xf32>
    %cst_6 = arith.constant dense<0.000000e+00> : vector<128xf32>
    %11 = vector.multi_reduction <add>, %10, %cst_6 [1] : vector<128x8xf32> to vector<128xf32>
    %12 = vector.shape_cast %11 : vector<128xf32> to vector<128x1xf32>
    %13 = tpu.reciprocal %12 : vector<128x1xf32> -> vector<128x1xf32>
    %14 = vector.broadcast %13 : vector<128x1xf32> to vector<128x8xf32>
    %15 = arith.mulf %10, %14 : vector<128x8xf32>
    %16 = tpu.iota {dimensions = array<i32: 1>} : vector<128x8xi32>
    %17 = vector.broadcast %7 : vector<128x1xf32> to vector<128x8xf32>
    %18 = arith.cmpf oge, %5, %17 : vector<128x8xf32>
    %c8_i32 = arith.constant 8 : i32
    %19 = vector.broadcast %c8_i32 : i32 to vector<128x8xi32>
    %20 = arith.select %18, %16, %19 : vector<128x8xi1>, vector<128x8xi32>
    %cst_7 = arith.constant dense<2147483647> : vector<128xi32>
    %21 = vector.multi_reduction <minsi>, %20, %cst_7 [1] : vector<128x8xi32> to vector<128xi32>
    %22 = vector.shape_cast %21 : vector<128xi32> to vector<128x1xi32>
    %23 = math.log %12 : vector<128x1xf32>
    %24 = vector.broadcast %7 : vector<128x1xf32> to vector<128x8xf32>
    %25 = arith.subf %5, %24 : vector<128x8xf32>
    %26 = arith.mulf %15, %25 : vector<128x8xf32>
    %cst_8 = arith.constant dense<0.000000e+00> : vector<128xf32>
    %27 = vector.multi_reduction <add>, %26, %cst_8 [1] : vector<128x8xf32> to vector<128xf32>
    %28 = vector.shape_cast %27 : vector<128xf32> to vector<128x1xf32>
    %29 = arith.subf %23, %28 : vector<128x1xf32>
    %cst_9 = arith.constant 0.000000e+00 : f32
    %30 = vector.broadcast %cst_9 : f32 to vector<128x128xf32>
    %c0_10 = arith.constant 0 : index
    %c0_11 = arith.constant 0 : index
    %31 = vector.load %arg4[%c0_10, %c0_11] : memref<128x128xf32, #tpu.memory_space<vmem>>, vector<128x128xf32>
    tpu.vector_store %arg4[%c0_10, %c0_11], %30 {strides = array<i32>} : memref<128x128xf32, #tpu.memory_space<vmem>>, vector<128x128xf32>,
    %c0_12 = arith.constant 0 : index
    %c0_13 = arith.constant 0 : index
    %32 = vector.load %arg4[%c0_12, %c0_13] : memref<128x128xf32, #tpu.memory_space<vmem>>, vector<128x8xf32>
    tpu.vector_store %arg4[%c0_12, %c0_13], %15 {strides = array<i32>} : memref<128x128xf32, #tpu.memory_space<vmem>>, vector<128x8xf32>,
    %33 = arith.sitofp %22 : vector<128x1xi32> to vector<128x1xf32>
    %c0_14 = arith.constant 0 : index
    %c8 = arith.constant 8 : index
    %34 = vector.load %arg4[%c0_14, %c8] : memref<128x128xf32, #tpu.memory_space<vmem>>, vector<128x1xf32>
    tpu.vector_store %arg4[%c0_14, %c8], %33 {strides = array<i32>} : memref<128x128xf32, #tpu.memory_space<vmem>>, vector<128x1xf32>,
    %c0_15 = arith.constant 0 : index
    %c9 = arith.constant 9 : index
    %35 = vector.load %arg4[%c0_15, %c9] : memref<128x128xf32, #tpu.memory_space<vmem>>, vector<128x1xf32>
    tpu.vector_store %arg4[%c0_15, %c9], %23 {strides = array<i32>} : memref<128x128xf32, #tpu.memory_space<vmem>>, vector<128x1xf32>,
    %c0_16 = arith.constant 0 : index
    %c10 = arith.constant 10 : index
    %36 = vector.load %arg4[%c0_16, %c10] : memref<128x128xf32, #tpu.memory_space<vmem>>, vector<128x1xf32>
    tpu.vector_store %arg4[%c0_16, %c10], %29 {strides = array<i32>} : memref<128x128xf32, #tpu.memory_space<vmem>>, vector<128x1xf32>,
    return
  }
  func.func @transform_0(%arg0: i32) -> (i32, i32) {
    %c0_i32 = arith.constant 0 : i32
    %c0_i32_0 = arith.constant 0 : i32
    return %arg0, %c0_i32 : i32, i32
  }
  func.func @transform_1(%arg0: i32) -> (i32, i32) {
    %c0_i32 = arith.constant 0 : i32
    %c0_i32_0 = arith.constant 0 : i32
    %c0_i32_1 = arith.constant 0 : i32
    return %c0_i32, %c0_i32_0 : i32, i32
  }
  func.func @transform_2(%arg0: i32) -> (i32, i32) {
    %c0_i32 = arith.constant 0 : i32
    %c0_i32_0 = arith.constant 0 : i32
    %c0_i32_1 = arith.constant 0 : i32
    return %c0_i32, %c0_i32_0 : i32, i32
  }
  func.func @transform_3(%arg0: i32) -> (i32, i32) {
    %c0_i32 = arith.constant 0 : i32
    %c0_i32_0 = arith.constant 0 : i32
    return %arg0, %c0_i32 : i32, i32
  }
}

</mosaic_0001>

<llo_original>
// kernel: tpu_custom_call.1
$region0: #{tpu_custom_call.1}
  #allocation0 [shape = 'u32[]', space=smem, size = 0x4, offset = 0x4, fixed_abs, tag = 'smem constant byte address 0x4 - core index']
  #allocation1 [shape = 'u32[144,128]{1,0:T(1,128)}', space=vmem, size = 0x12000, scoped, tag = 'internal scratch']
  %s0 = inlined_call_operand.vmem [shape: f32[256,32], index: 0, kind: input, shape index: {}]
  %s1 = inlined_call_operand.vmem [shape: f32[32,8], index: 1, kind: input, shape index: {}]
  %s2 = inlined_call_operand.vmem [shape: f32[1,8], index: 2, kind: input, shape index: {}]
  %s3 = inlined_call_operand.hbm [shape: f32[256,128], index: 3, kind: output, shape index: {}]
  %s4 = sld [smem:[#allocation0]]
  $region45: #{tpu_custom_call.1} parent=0
    _
  %s6 = ssub.s32 1, %s4
  %s7 = scalar_select 0, %s6, %s4
  $region1: #{tpu_custom_call.1} parent=0
    #allocation2 [shape = 'u8[131072]{0}', space=vmem, size = 0x20000, scoped, tag = 'output window, operand 0']
    #allocation3 [shape = 's32[2]{0}', space=sflag, size = 0x8, scoped, tag = 'scoped memory for tpu_custom_call.1']
    %8 = vsyncpa [#allocation3], 0
    %s9 = scalar_lea.sflag [#allocation3], 1
    %10 = vsyncpa %s9, 0
    loop: start=0, step=1, limit=4
    $region2: #{tpu_custom_call.1} parent=1 // loop_pre_header
      _
    $region3: #{tpu_custom_call.1} parent=1 // loop_header
      %s12 = sphi 0, %s16
      %p13 = scmp.ge.s32.totalorder %s12, 4
      %s22 = sphi 0, %s24
      %s25 = sphi 0, %s22
      %s26 = sphi 0, %s25
      %s42 = sphi 0, %s26
      %s46 = sphi 0, %s46
      %s48 = sphi 0, %s46
      %s49 = sphi 0, %s48
      %s63 = sphi 0, %s49
      %s67 = sphi 0, %s67
      %s69 = sphi 0, %s67
      %s70 = sphi 0, %s69
      %s84 = sphi 0, %s70
      %s90 = sphi 0, %s92
      %s93 = sphi 0, %s90
      %s94 = sphi 0, %s93
      %s110 = sphi 0, %s94
    $region4: #{tpu_custom_call.1} parent=1 // loop_header_branch
      %15 = sbr.rel (%p13) target = $region8
    $region5: #{tpu_custom_call.1} parent=1 // loop_body
      %s17 = ssub.s32 %s12, 1
      %s18 = ssub.s32 %s12, 2
      %s19 = sadd.s32 %s12, 1
      %s20 = ssub.s32 %s12, %s19
      %p21 = scmp.eq.s32.totalorder %s20, 0
      %s23 = sadd.s32 %s22, 1
      %s24 = scalar_select %p21, %s22, %s23
      %p27 = pneg %p21
      %p28 = scmp.eq.s32.totalorder %s12, 1
      %p29 = por %p27, %p28
      %p30 = scmp.ne.s32.totalorder %s22, %s25
      %p31 = scmp.eq.s32.totalorder %s12, 0
      %p32 = por %p30, %p31
      %p33 = scmp.ne.s32.totalorder %s22, %s25
      %p34 = scmp.eq.s32.totalorder %s17, 1
      %p35 = por %p33, %p34
      %p36 = scmp.ne.s32.totalorder %s25, %s26
      %p37 = scmp.eq.s32.totalorder %s17, 0
      %p38 = por %p36, %p37
      %p39 = scmp.ne.s32.totalorder %s25, %s26
      %p40 = scmp.eq.s32.totalorder %s18, 1
      %p41 = por %p39, %p40
      %p43 = scmp.ne.s32.totalorder %s26, %s42
      %p44 = scmp.eq.s32.totalorder %s18, 0
      %p45 = por %p43, %p44
      %s47 = sadd.s32 %s46, 1
      %p50 = scmp.eq.s32.totalorder %s12, 1
      %p51 = scmp.ne.s32.totalorder %s46, %s48
      %p52 = scmp.eq.s32.totalorder %s12, 0
      %p53 = por %p51, %p52
      %p54 = scmp.ne.s32.totalorder %s46, %s48
      %p55 = scmp.eq.s32.totalorder %s17, 1
      %p56 = por %p54, %p55
      %p57 = scmp.ne.s32.totalorder %s48, %s49
      %p58 = scmp.eq.s32.totalorder %s17, 0
      %p59 = por %p57, %p58
      %p60 = scmp.ne.s32.totalorder %s48, %s49
      %p61 = scmp.eq.s32.totalorder %s18, 1
      %p62 = por %p60, %p61
      %p64 = scmp.ne.s32.totalorder %s49, %s63
      %p65 = scmp.eq.s32.totalorder %s18, 0
      %p66 = por %p64, %p65
      %s68 = sadd.s32 %s67, 1
      %p71 = scmp.eq.s32.totalorder %s12, 1
      %p72 = scmp.ne.s32.totalorder %s67, %s69
      %p73 = scmp.eq.s32.totalorder %s12, 0
      %p74 = por %p72, %p73
      %p75 = scmp.ne.s32.totalorder %s67, %s69
      %p76 = scmp.eq.s32.totalorder %s17, 1
      %p77 = por %p75, %p76
      %p78 = scmp.ne.s32.totalorder %s69, %s70
      %p79 = scmp.eq.s32.totalorder %s17, 0
      %p80 = por %p78, %p79
      %p81 = scmp.ne.s32.totalorder %s69, %s70
      %p82 = scmp.eq.s32.totalorder %s18, 1
      %p83 = por %p81, %p82
      %p85 = scmp.ne.s32.totalorder %s70, %s84
      %p86 = scmp.eq.s32.totalorder %s18, 0
      %p87 = por %p85, %p86
      %s88 = ssub.s32 %s12, %s19
      %p89 = scmp.eq.s32.totalorder %s88, 0
      %s91 = sadd.s32 %s90, 1
      %s92 = scalar_select %p89, %s90, %s91
      %p95 = pneg %p89
      %p96 = scmp.eq.s32.totalorder %s12, 1
      %p97 = por %p95, %p96
      %p98 = scmp.ne.s32.totalorder %s90, %s93
      %p99 = scmp.eq.s32.totalorder %s12, 0
      %p100 = por %p98, %p99
      %p101 = scmp.ne.s32.totalorder %s90, %s93
      %p102 = scmp.eq.s32.totalorder %s17, 1
      %p103 = por %p101, %p102
      %p104 = scmp.ne.s32.totalorder %s93, %s94
      %p105 = scmp.eq.s32.totalorder %s17, 0
      %p106 = por %p104, %p105
      %p107 = scmp.ne.s32.totalorder %s93, %s94
      %p108 = scmp.eq.s32.totalorder %s18, 1
      %p109 = por %p107, %p108
      %p111 = scmp.ne.s32.totalorder %s94, %s110
      %p112 = scmp.eq.s32.totalorder %s18, 0
      %p113 = por %p111, %p112
      %p114 = scmp.le.s32.totalorder 1, %s12
      %p115 = scmp.lt.s32.totalorder %s12, 3
      %p116 = pnand %p114, %p115
      %p117 = pneg %p116
      // Predicated region
      $region9: #{tpu_custom_call.1} parent=5 // pred_check
        _
      $region10: #{tpu_custom_call.1} parent=5 // pred_check_branch
        %119 = sbr.rel (%p116) target = $region12
      $region11: #{tpu_custom_call.1} parent=5 // pred_region
        %s120 = ssub.s32 %s12, 1
        // Predicated region
        $region13: #{tpu_custom_call.1} parent=11 // pred_check
          %p121 = pneg %p59
        $region14: #{tpu_custom_call.1} parent=11 // pred_check_branch
          %123 = sbr.rel (%p121) target = $region16
        $region15: #{tpu_custom_call.1} parent=11 // pred_region
          _
        $region16: #{tpu_custom_call.1} parent=11 // pred_fallthru
          _
        // Predicated region
        $region17: #{tpu_custom_call.1} parent=11 // pred_check
          %p124 = pneg %p80
        $region18: #{tpu_custom_call.1} parent=11 // pred_check_branch
          %126 = sbr.rel (%p124) target = $region20
        $region19: #{tpu_custom_call.1} parent=11 // pred_region
          _
        $region20: #{tpu_custom_call.1} parent=11 // pred_fallthru
          _
      $region12: #{tpu_custom_call.1} parent=5 // pred_fallthru
        _
      %p127 = scmp.lt.s32.totalorder %s12, 2
      // Predicated region
      $region21: #{tpu_custom_call.1} parent=5 // pred_check
        %p128 = pneg %p127
      $region22: #{tpu_custom_call.1} parent=5 // pred_check_branch
        %130 = sbr.rel (%p128) target = $region24
      $region23: #{tpu_custom_call.1} parent=5 // pred_region
        // Predicated region
        $region25: #{tpu_custom_call.1} parent=23 // pred_check
          %p131 = pneg %p32
        $region26: #{tpu_custom_call.1} parent=23 // pred_check_branch
          %133 = sbr.rel (%p131) target = $region28
        $region27: #{tpu_custom_call.1} parent=23 // pred_region
          %s134 = smul.u32 16, %s12
          %p135 = scmp.lt.s32.totalorder %s134, 31
          %s136 = scalar_select %p135, %s134, 31
          %s137 = smul.addr %s136, 8
          %s138 = scalar_lea.vmem %s0, %s137
          %s139 = smul.u32 16, %s12
        $region28: #{tpu_custom_call.1} parent=23 // pred_fallthru
          _
      $region24: #{tpu_custom_call.1} parent=5 // pred_fallthru
        _
      %p140 = scmp.le.s32.totalorder 1, %s12
      %p141 = scmp.lt.s32.totalorder %s12, 3
      %p142 = pnand %p140, %p141
      %p143 = pneg %p142
      // Predicated region
      $region29: #{tpu_custom_call.1} parent=5 // pred_check
        _
      $region30: #{tpu_custom_call.1} parent=5 // pred_check_branch
        %145 = sbr.rel (%p142) target = $region32
      $region31: #{tpu_custom_call.1} parent=5 // pred_region
        %s146 = ssub.s32 %s12, 1
        %s147 = smul.u32 16, %s17
        %p148 = scmp.lt.s32.totalorder %s147, 31
        %s149 = scalar_select %p148, %s147, 31
        %s150 = smul.addr %s149, 8
        %s151 = scalar_lea.vmem %s0, %s150
        %p152 = pneg %p38
        %p153 = pneg %p35
        %p154 = pneg %p59
        %p155 = pneg %p56
        %p156 = pneg %p80
        %p157 = pneg %p77
        %p158 = pneg %p106
        %p159 = pneg %p103
        %s160 = sand.u32 %s93, 1
        %s161 = scalar_lea.sflag [#allocation3], %s160
        %s162 = sand.u32 %s93, 1
        %s163 = smul.addr %s162, 128
        %s164 = scalar_lea.vmem [#allocation2], %s163
        %s165 = smul.u32 16, %s17
        %p166 = scmp.lt.s32.totalorder %s165, 31
        %s167 = scalar_select %p166, %s165, 31
        %s168 = smul.addr %s167, 8
        %s169 = scalar_lea.vmem %s0, %s168
        %s170 = smul.u32 16, %s17
        %s171 = smul.u32 16, %s17
        %v172 = vld [vmem:[%s169] sm:$0xff]
        %v173 = vld [vmem:[%s169 + $0x8] sm:$0xff]
        %v174 = vld [vmem:[%s169 + $0x10] sm:$0xff]
        %v175 = vld [vmem:[%s169 + $0x18] sm:$0xff]
        %v176 = vld [vmem:[%s169 + $0x20] sm:$0xff]
        %v177 = vld [vmem:[%s169 + $0x28] sm:$0xff]
        %v178 = vld [vmem:[%s169 + $0x30] sm:$0xff]
        %v179 = vld [vmem:[%s169 + $0x38] sm:$0xff]
        %v180 = vld [vmem:[%s169 + $0x40] sm:$0xff]
        %v181 = vld [vmem:[%s169 + $0x48] sm:$0xff]
        %v182 = vld [vmem:[%s169 + $0x50] sm:$0xff]
        %v183 = vld [vmem:[%s169 + $0x58] sm:$0xff]
        %v184 = vld [vmem:[%s169 + $0x60] sm:$0xff]
        %v185 = vld [vmem:[%s169 + $0x68] sm:$0xff]
        %v186 = vld [vmem:[%s169 + $0x70] sm:$0xff]
        %v187 = vld [vmem:[%s169 + $0x78] sm:$0xff]
        %v188 = vld [vmem:[%s1] sm:$0xff]
        %v189 = vld [vmem:[%s1 + $0x8] sm:$0xff]
        %v190 = vld [vmem:[%s1 + $0x10] sm:$0xff]
        %v191 = vld [vmem:[%s1 + $0x18] sm:$0xff]
        %v192 = vld [vmem:[%s2] sm:$0x1]
        %v194 = vlaneseq
        %v195 = vshrl.u32 %v194, 7
        %v196 = vsub.s32 0, %v195
        %v197 = vrot.slane %v192, %v196
        %vm199 = vcmask 261120
        %v201 = vsel %vm199, %v172, 0
        %v204 = vsel %vm199, %v173, 0
        %v207 = vsel %vm199, %v174, 0
        %v210 = vsel %vm199, %v175, 0
        %v213 = vsel %vm199, %v176, 0
        %v216 = vsel %vm199, %v177, 0
        %v219 = vsel %vm199, %v178, 0
        %v222 = vsel %vm199, %v179, 0
        %v225 = vsel %vm199, %v180, 0
        %v228 = vsel %vm199, %v181, 0
        %v231 = vsel %vm199, %v182, 0
        %v234 = vsel %vm199, %v183, 0
        %v237 = vsel %vm199, %v184, 0
        %v240 = vsel %vm199, %v185, 0
        %v243 = vsel %vm199, %v186, 0
        %v246 = vsel %vm199, %v187, 0
        %248 = vmatprep.subr.mxu0 0.0
        %249 = vmatpush1.msra.mxu0 %v188
        %250 = vmatprep.subr.mxu0 0.0
        %251 = vmatpush1.msra.mxu0 %v189
        %252 = vmatprep.subr.mxu0 0.0
        %253 = vmatpush1.msra.mxu0 %v190
        %254 = vmatprep.subr.mxu0 0.0
        %255 = vmatpush1.msra.mxu0 %v191
        %256 = vmatprep.subr.mxu0 0.0
        %257 = vmatpush1.msra.mxu0 0.0
        %258 = vmatprep.subr.mxu0 0.0
        %259 = vmatpush1.msra.mxu0 0.0
        %260 = vmatprep.subr.mxu0 0.0
        %261 = vmatpush1.msra.mxu0 0.0
        %262 = vmatprep.subr.mxu0 0.0
        %263 = vmatpush1.msra.mxu0 0.0
        %264 = vmatprep.subr.mxu0 0.0
        %265 = vmatpush1.msra.mxu0 0.0
        %266 = vmatprep.subr.mxu0 0.0
        %267 = vmatpush1.msra.mxu0 0.0
        %268 = vmatprep.subr.mxu0 0.0
        %269 = vmatpush1.msra.mxu0 0.0
        %270 = vmatprep.subr.mxu0 0.0
        %271 = vmatpush1.msra.mxu0 0.0
        %272 = vmatprep.subr.mxu0 0.0
        %273 = vmatpush1.msra.mxu0 0.0
        %274 = vmatprep.subr.mxu0 0.0
        %275 = vmatpush1.msra.mxu0 0.0
        %276 = vmatprep.subr.mxu0 0.0
        %277 = vmatpush1.msra.mxu0 0.0
        %278 = vmatprep.subr.mxu0 0.0
        %279 = vmatpush1.msra.mxu0 0.0
        %280 = vmatprep.subr.mxu0 0.0
        %281 = vmatpush1.msra.mxu0 0.0
        %282 = vmatprep.subr.mxu0 0.0
        %283 = vmatpush1.msra.mxu0 0.0
        %284 = vmatprep.subr.mxu0 0.0
        %285 = vmatpush1.msra.mxu0 0.0
        %286 = vmatprep.subr.mxu0 0.0
        %287 = vmatpush1.msra.mxu0 0.0
        %288 = vmatprep.subr.mxu0 0.0
        %289 = vmatpush1.msra.mxu0 0.0
        %290 = vmatprep.subr.mxu0 0.0
        %291 = vmatpush1.msra.mxu0 0.0
        %292 = vmatprep.subr.mxu0 0.0
        %293 = vmatpush1.msra.mxu0 0.0
        %294 = vmatprep.subr.mxu0 0.0
        %295 = vmatpush1.msra.mxu0 0.0
        %296 = vmatprep.subr.mxu0 0.0
        %297 = vmatpush1.msra.mxu0 0.0
        %298 = vmatprep.subr.mxu0 0.0
        %299 = vmatpush1.msra.mxu0 0.0
        %300 = vmatprep.subr.mxu0 0.0
        %301 = vmatpush1.msra.mxu0 0.0
        %302 = vmatprep.subr.mxu0 0.0
        %303 = vmatpush1.msra.mxu0 0.0
        %304 = vmatprep.subr.mxu0 0.0
        %305 = vmatpush1.msra.mxu0 0.0
        %306 = vmatprep.subr.mxu0 0.0
        %307 = vmatpush1.msra.mxu0 0.0
        %308 = vmatprep.subr.mxu0 0.0
        %309 = vmatpush1.msra.mxu0 0.0
        %310 = vmatprep.subr.mxu0 0.0
        %311 = vmatpush1.msra.mxu0 0.0
        %312 = vmatprep.mubr.f32.mxu0 0.0
        %313 = vmatmul.mubr.f32.gmra.mrb[0].mxu0 %v201
        %v314 = vpop.f32.mrb[0].mxu0
        %v315 = vadd.f32 %v197, %v314
        %v316 = vpop.f32.mrb[0].mxu0
        %317 = vmatprep.mubr.f32.mxu0 0.0
        %318 = vmatmul.mubr.f32.gmra.mrb[0].mxu0 %v204
        %v319 = vpop.f32.mrb[0].mxu0
        %v320 = vadd.f32 %v197, %v319
        %v321 = vpop.f32.mrb[0].mxu0
        %322 = vmatprep.mubr.f32.mxu0 0.0
        %323 = vmatmul.mubr.f32.gmra.mrb[0].mxu0 %v207
        %v324 = vpop.f32.mrb[0].mxu0
        %v325 = vadd.f32 %v197, %v324
        %v326 = vpop.f32.mrb[0].mxu0
        %327 = vmatprep.mubr.f32.mxu0 0.0
        %328 = vmatmul.mubr.f32.gmra.mrb[0].mxu0 %v210
        %v329 = vpop.f32.mrb[0].mxu0
        %v330 = vadd.f32 %v197, %v329
        %v331 = vpop.f32.mrb[0].mxu0
        %332 = vmatprep.mubr.f32.mxu0 0.0
        %333 = vmatmul.mubr.f32.gmra.mrb[0].mxu0 %v213
        %v334 = vpop.f32.mrb[0].mxu0
        %v335 = vadd.f32 %v197, %v334
        %v336 = vpop.f32.mrb[0].mxu0
        %337 = vmatprep.mubr.f32.mxu0 0.0
        %338 = vmatmul.mubr.f32.gmra.mrb[0].mxu0 %v216
        %v339 = vpop.f32.mrb[0].mxu0
        %v340 = vadd.f32 %v197, %v339
        %v341 = vpop.f32.mrb[0].mxu0
        %342 = vmatprep.mubr.f32.mxu0 0.0
        %343 = vmatmul.mubr.f32.gmra.mrb[0].mxu0 %v219
        %v344 = vpop.f32.mrb[0].mxu0
        %v345 = vadd.f32 %v197, %v344
        %v346 = vpop.f32.mrb[0].mxu0
        %347 = vmatprep.mubr.f32.mxu0 0.0
        %348 = vmatmul.mubr.f32.gmra.mrb[0].mxu0 %v222
        %v349 = vpop.f32.mrb[0].mxu0
        %v350 = vadd.f32 %v197, %v349
        %v351 = vpop.f32.mrb[0].mxu0
        %352 = vmatprep.mubr.f32.mxu0 0.0
        %353 = vmatmul.mubr.f32.gmra.mrb[0].mxu0 %v225
        %v354 = vpop.f32.mrb[0].mxu0
        %v355 = vadd.f32 %v197, %v354
        %v356 = vpop.f32.mrb[0].mxu0
        %357 = vmatprep.mubr.f32.mxu0 0.0
        %358 = vmatmul.mubr.f32.gmra.mrb[0].mxu0 %v228
        %v359 = vpop.f32.mrb[0].mxu0
        %v360 = vadd.f32 %v197, %v359
        %v361 = vpop.f32.mrb[0].mxu0
        %362 = vmatprep.mubr.f32.mxu0 0.0
        %363 = vmatmul.mubr.f32.gmra.mrb[0].mxu0 %v231
        %v364 = vpop.f32.mrb[0].mxu0
        %v365 = vadd.f32 %v197, %v364
        %v366 = vpop.f32.mrb[0].mxu0
        %367 = vmatprep.mubr.f32.mxu0 0.0
        %368 = vmatmul.mubr.f32.gmra.mrb[0].mxu0 %v234
        %v369 = vpop.f32.mrb[0].mxu0
        %v370 = vadd.f32 %v197, %v369
        %v371 = vpop.f32.mrb[0].mxu0
        %372 = vmatprep.mubr.f32.mxu0 0.0
        %373 = vmatmul.mubr.f32.gmra.mrb[0].mxu0 %v237
        %v374 = vpop.f32.mrb[0].mxu0
        %v375 = vadd.f32 %v197, %v374
        %v376 = vpop.f32.mrb[0].mxu0
        %377 = vmatprep.mubr.f32.mxu0 0.0
        %378 = vmatmul.mubr.f32.gmra.mrb[0].mxu0 %v240
        %v379 = vpop.f32.mrb[0].mxu0
        %v380 = vadd.f32 %v197, %v379
        %v381 = vpop.f32.mrb[0].mxu0
        %382 = vmatprep.mubr.f32.mxu0 0.0
        %383 = vmatmul.mubr.f32.gmra.mrb[0].mxu0 %v243
        %v384 = vpop.f32.mrb[0].mxu0
        %v385 = vadd.f32 %v197, %v384
        %v386 = vpop.f32.mrb[0].mxu0
        %387 = vmatprep.mubr.f32.mxu0 0.0
        %388 = vmatmul.mubr.f32.gmra.mrb[0].mxu0 %v246
        %v389 = vpop.f32.mrb[0].mxu0
        %v390 = vadd.f32 %v197, %v389
        %v391 = vpop.f32.mrb[0].mxu0
        %392 = vdwg.mxu0
        %vm393 = vcmask 64512
        %v394 = vsel %vm393, %v315, -inf
        %395 = vmax.xlane.f32.xlu0 %v394
        %v396 = vpop.xlane.xlu0 %395
        %v397 = vsel %vm393, %v320, -inf
        %398 = vmax.xlane.f32.xlu0 %v397
        %v399 = vpop.xlane.xlu0 %398
        %v400 = vsel %vm393, %v325, -inf
        %401 = vmax.xlane.f32.xlu0 %v400
        %v402 = vpop.xlane.xlu0 %401
        %v403 = vsel %vm393, %v330, -inf
        %404 = vmax.xlane.f32.xlu0 %v403
        %v405 = vpop.xlane.xlu0 %404
        %v406 = vsel %vm393, %v335, -inf
        %407 = vmax.xlane.f32.xlu0 %v406
        %v408 = vpop.xlane.xlu0 %407
        %v409 = vsel %vm393, %v340, -inf
        %410 = vmax.xlane.f32.xlu0 %v409
        %v411 = vpop.xlane.xlu0 %410
        %v412 = vsel %vm393, %v345, -inf
        %413 = vmax.xlane.f32.xlu0 %v412
        %v414 = vpop.xlane.xlu0 %413
        %v415 = vsel %vm393, %v350, -inf
        %416 = vmax.xlane.f32.xlu0 %v415
        %v417 = vpop.xlane.xlu0 %416
        %v418 = vsel %vm393, %v355, -inf
        %419 = vmax.xlane.f32.xlu0 %v418
        %v420 = vpop.xlane.xlu0 %419
        %v421 = vsel %vm393, %v360, -inf
        %422 = vmax.xlane.f32.xlu0 %v421
        %v423 = vpop.xlane.xlu0 %422
        %v424 = vsel %vm393, %v365, -inf
        %425 = vmax.xlane.f32.xlu0 %v424
        %v426 = vpop.xlane.xlu0 %425
        %v427 = vsel %vm393, %v370, -inf
        %428 = vmax.xlane.f32.xlu0 %v427
        %v429 = vpop.xlane.xlu0 %428
        %v430 = vsel %vm393, %v375, -inf
        %431 = vmax.xlane.f32.xlu0 %v430
        %v432 = vpop.xlane.xlu0 %431
        %v433 = vsel %vm393, %v380, -inf
        %434 = vmax.xlane.f32.xlu0 %v433
        %v435 = vpop.xlane.xlu0 %434
        %v436 = vsel %vm393, %v385, -inf
        %437 = vmax.xlane.f32.xlu0 %v436
        %v438 = vpop.xlane.xlu0 %437
        %v439 = vsel %vm393, %v390, -inf
        %440 = vmax.xlane.f32.xlu0 %v439
        %v441 = vpop.xlane.xlu0 %440
        %v442 = vsub.f32 %v315, %v396
        %v443 = vsub.f32 %v320, %v399
        %v444 = vsub.f32 %v325, %v402
        %v445 = vsub.f32 %v330, %v405
        %v446 = vsub.f32 %v335, %v408
        %v447 = vsub.f32 %v340, %v411
        %v448 = vsub.f32 %v345, %v414
        %v449 = vsub.f32 %v350, %v417
        %v450 = vsub.f32 %v355, %v420
        %v451 = vsub.f32 %v360, %v423
        %v452 = vsub.f32 %v365, %v426
        %v453 = vsub.f32 %v370, %v429
        %v454 = vsub.f32 %v375, %v432
        %v455 = vsub.f32 %v380, %v435
        %v456 = vsub.f32 %v385, %v438
        %v457 = vsub.f32 %v390, %v441
        %v458 = vmul.f32 %v442, 1.442695
        %v459 = vpow.pop %v458
        %v460 = vmul.f32 %v443, 1.442695
        %v461 = vpow.pop %v460
        %v462 = vmul.f32 %v444, 1.442695
        %v463 = vpow.pop %v462
        %v464 = vmul.f32 %v445, 1.442695
        %v465 = vpow.pop %v464
        %v466 = vmul.f32 %v446, 1.442695
        %v467 = vpow.pop %v466
        %v468 = vmul.f32 %v447, 1.442695
        %v469 = vpow.pop %v468
        %v470 = vmul.f32 %v448, 1.442695
        %v471 = vpow.pop %v470
        %v472 = vmul.f32 %v449, 1.442695
        %v473 = vpow.pop %v472
        %v474 = vmul.f32 %v450, 1.442695
        %v475 = vpow.pop %v474
        %v476 = vmul.f32 %v451, 1.442695
        %v477 = vpow.pop %v476
        %v478 = vmul.f32 %v452, 1.442695
        %v479 = vpow.pop %v478
        %v480 = vmul.f32 %v453, 1.442695
        %v481 = vpow.pop %v480
        %v482 = vmul.f32 %v454, 1.442695
        %v483 = vpow.pop %v482
        %v484 = vmul.f32 %v455, 1.442695
        %v485 = vpow.pop %v484
        %v486 = vmul.f32 %v456, 1.442695
        %v487 = vpow.pop %v486
        %v488 = vmul.f32 %v457, 1.442695
        %v489 = vpow.pop %v488
        %v490 = vsel %vm393, %v459, 0.0
        %491 = vadd.xlane.f32.xlu0 %v490
        %v492 = vpop.xlane.xlu0 %491
        %v493 = vsel %vm393, %v461, 0.0
        %494 = vadd.xlane.f32.xlu0 %v493
        %v495 = vpop.xlane.xlu0 %494
        %v496 = vsel %vm393, %v463, 0.0
        %497 = vadd.xlane.f32.xlu0 %v496
        %v498 = vpop.xlane.xlu0 %497
        %v499 = vsel %vm393, %v465, 0.0
        %500 = vadd.xlane.f32.xlu0 %v499
        %v501 = vpop.xlane.xlu0 %500
        %v502 = vsel %vm393, %v467, 0.0
        %503 = vadd.xlane.f32.xlu0 %v502
        %v504 = vpop.xlane.xlu0 %503
        %v505 = vsel %vm393, %v469, 0.0
        %506 = vadd.xlane.f32.xlu0 %v505
        %v507 = vpop.xlane.xlu0 %506
        %v508 = vsel %vm393, %v471, 0.0
        %509 = vadd.xlane.f32.xlu0 %v508
        %v510 = vpop.xlane.xlu0 %509
        %v511 = vsel %vm393, %v473, 0.0
        %512 = vadd.xlane.f32.xlu0 %v511
        %v513 = vpop.xlane.xlu0 %512
        %v514 = vsel %vm393, %v475, 0.0
        %515 = vadd.xlane.f32.xlu0 %v514
        %v516 = vpop.xlane.xlu0 %515
        %v517 = vsel %vm393, %v477, 0.0
        %518 = vadd.xlane.f32.xlu0 %v517
        %v519 = vpop.xlane.xlu0 %518
        %v520 = vsel %vm393, %v479, 0.0
        %521 = vadd.xlane.f32.xlu0 %v520
        %v522 = vpop.xlane.xlu0 %521
        %v523 = vsel %vm393, %v481, 0.0
        %524 = vadd.xlane.f32.xlu0 %v523
        %v525 = vpop.xlane.xlu0 %524
        %v526 = vsel %vm393, %v483, 0.0
        %527 = vadd.xlane.f32.xlu0 %v526
        %v528 = vpop.xlane.xlu0 %527
        %v529 = vsel %vm393, %v485, 0.0
        %530 = vadd.xlane.f32.xlu0 %v529
        %v531 = vpop.xlane.xlu0 %530
        %v532 = vsel %vm393, %v487, 0.0
        %533 = vadd.xlane.f32.xlu0 %v532
        %v534 = vpop.xlane.xlu0 %533
        %v535 = vsel %vm393, %v489, 0.0
        %536 = vadd.xlane.f32.xlu0 %v535
        %v537 = vpop.xlane.xlu0 %536
        %v538 = vrcp.pop %v492
        %v539 = vrcp.pop %v495
        %v540 = vrcp.pop %v498
        %v541 = vrcp.pop %v501
        %v542 = vrcp.pop %v504
        %v543 = vrcp.pop %v507
        %v544 = vrcp.pop %v510
        %v545 = vrcp.pop %v513
        %v546 = vrcp.pop %v516
        %v547 = vrcp.pop %v519
        %v548 = vrcp.pop %v522
        %v549 = vrcp.pop %v525
        %v550 = vrcp.pop %v528
        %v551 = vrcp.pop %v531
        %v552 = vrcp.pop %v534
        %v553 = vrcp.pop %v537
        %v554 = vmul.f32 %v459, %v538
        %v555 = vmul.f32 %v461, %v539
        %v556 = vmul.f32 %v463, %v540
        %v557 = vmul.f32 %v465, %v541
        %v558 = vmul.f32 %v467, %v542
        %v559 = vmul.f32 %v469, %v543
        %v560 = vmul.f32 %v471, %v544
        %v561 = vmul.f32 %v473, %v545
        %v562 = vmul.f32 %v475, %v546
        %v563 = vmul.f32 %v477, %v547
        %v564 = vmul.f32 %v479, %v548
        %v565 = vmul.f32 %v481, %v549
        %v566 = vmul.f32 %v483, %v550
        %v567 = vmul.f32 %v485, %v551
        %v568 = vmul.f32 %v487, %v552
        %v569 = vmul.f32 %v489, %v553
        %v570 = vlaneseq
        %v571 = vand.u32 %v570, 127
        %vm572 = vcmp.ge.f32.partialorder %v315, %v396
        %vm573 = vcmp.ge.f32.partialorder %v320, %v399
        %vm574 = vcmp.ge.f32.partialorder %v325, %v402
        %vm575 = vcmp.ge.f32.partialorder %v330, %v405
        %vm576 = vcmp.ge.f32.partialorder %v335, %v408
        %vm577 = vcmp.ge.f32.partialorder %v340, %v411
        %vm578 = vcmp.ge.f32.partialorder %v345, %v414
        %vm579 = vcmp.ge.f32.partialorder %v350, %v417
        %vm580 = vcmp.ge.f32.partialorder %v355, %v420
        %vm581 = vcmp.ge.f32.partialorder %v360, %v423
        %vm582 = vcmp.ge.f32.partialorder %v365, %v426
        %vm583 = vcmp.ge.f32.partialorder %v370, %v429
        %vm584 = vcmp.ge.f32.partialorder %v375, %v432
        %vm585 = vcmp.ge.f32.partialorder %v380, %v435
        %vm586 = vcmp.ge.f32.partialorder %v385, %v438
        %vm587 = vcmp.ge.f32.partialorder %v390, %v441
        %v588 = vsel %vm572, %v571, 8
        %v589 = vsel %vm573, %v571, 8
        %v590 = vsel %vm574, %v571, 8
        %v591 = vsel %vm575, %v571, 8
        %v592 = vsel %vm576, %v571, 8
        %v593 = vsel %vm577, %v571, 8
        %v594 = vsel %vm578, %v571, 8
        %v595 = vsel %vm579, %v571, 8
        %v596 = vsel %vm580, %v571, 8
        %v597 = vsel %vm581, %v571, 8
        %v598 = vsel %vm582, %v571, 8
        %v599 = vsel %vm583, %v571, 8
        %v600 = vsel %vm584, %v571, 8
        %v601 = vsel %vm585, %v571, 8
        %v602 = vsel %vm586, %v571, 8
        %v603 = vsel %vm587, %v571, 8
        %v604 = vsel %vm393, %v588, 2147483647
        %v605 = vand.u32 %v604, 65535
        %v606 = vshra.s32 %v604, 16
        %v607 = vcvt.s32.f32 %v605
        %v608 = vcvt.s32.f32 %v606
        %609 = vmin.xlane.f32.xlu0 %v608
        %v610 = vpop.xlane.xlu0 %609
        %vm611 = vcmp.eq.f32.partialorder %v608, %v610
        %v612 = vsel %vm611, %v607, inf
        %613 = vmin.xlane.f32.xlu0 %v612
        %v614 = vpop.xlane.xlu0 %613
        %v615 = vcvt.f32.s32 %v614
        %v616 = vcvt.f32.s32 %v610
        %v617 = vshll.u32 %v616, 16
        %v618 = vadd.s32 %v617, %v615
        %v619 = vsel %vm393, %v589, 2147483647
        %v620 = vand.u32 %v619, 65535
        %v621 = vshra.s32 %v619, 16
        %v622 = vcvt.s32.f32 %v620
        %v623 = vcvt.s32.f32 %v621
        %624 = vmin.xlane.f32.xlu0 %v623
        %v625 = vpop.xlane.xlu0 %624
        %vm626 = vcmp.eq.f32.partialorder %v623, %v625
        %v627 = vsel %vm626, %v622, inf
        %628 = vmin.xlane.f32.xlu0 %v627
        %v629 = vpop.xlane.xlu0 %628
        %v630 = vcvt.f32.s32 %v629
        %v631 = vcvt.f32.s32 %v625
        %v632 = vshll.u32 %v631, 16
        %v633 = vadd.s32 %v632, %v630
        %v634 = vsel %vm393, %v590, 2147483647
        %v635 = vand.u32 %v634, 65535
        %v636 = vshra.s32 %v634, 16
        %v637 = vcvt.s32.f32 %v635
        %v638 = vcvt.s32.f32 %v636
        %639 = vmin.xlane.f32.xlu0 %v638
        %v640 = vpop.xlane.xlu0 %639
        %vm641 = vcmp.eq.f32.partialorder %v638, %v640
        %v642 = vsel %vm641, %v637, inf
        %643 = vmin.xlane.f32.xlu0 %v642
        %v644 = vpop.xlane.xlu0 %643
        %v645 = vcvt.f32.s32 %v644
        %v646 = vcvt.f32.s32 %v640
        %v647 = vshll.u32 %v646, 16
        %v648 = vadd.s32 %v647, %v645
        %v649 = vsel %vm393, %v591, 2147483647
        %v650 = vand.u32 %v649, 65535
        %v651 = vshra.s32 %v649, 16
        %v652 = vcvt.s32.f32 %v650
        %v653 = vcvt.s32.f32 %v651
        %654 = vmin.xlane.f32.xlu0 %v653
        %v655 = vpop.xlane.xlu0 %654
        %vm656 = vcmp.eq.f32.partialorder %v653, %v655
        %v657 = vsel %vm656, %v652, inf
        %658 = vmin.xlane.f32.xlu0 %v657
        %v659 = vpop.xlane.xlu0 %658
        %v660 = vcvt.f32.s32 %v659
        %v661 = vcvt.f32.s32 %v655
        %v662 = vshll.u32 %v661, 16
        %v663 = vadd.s32 %v662, %v660
        %v664 = vsel %vm393, %v592, 2147483647
        %v665 = vand.u32 %v664, 65535
        %v666 = vshra.s32 %v664, 16
        %v667 = vcvt.s32.f32 %v665
        %v668 = vcvt.s32.f32 %v666
        %669 = vmin.xlane.f32.xlu0 %v668
        %v670 = vpop.xlane.xlu0 %669
        %vm671 = vcmp.eq.f32.partialorder %v668, %v670
        %v672 = vsel %vm671, %v667, inf
        %673 = vmin.xlane.f32.xlu0 %v672
        %v674 = vpop.xlane.xlu0 %673
        %v675 = vcvt.f32.s32 %v674
        %v676 = vcvt.f32.s32 %v670
        %v677 = vshll.u32 %v676, 16
        %v678 = vadd.s32 %v677, %v675
        %v679 = vsel %vm393, %v593, 2147483647
        %v680 = vand.u32 %v679, 65535
        %v681 = vshra.s32 %v679, 16
        %v682 = vcvt.s32.f32 %v680
        %v683 = vcvt.s32.f32 %v681
        %684 = vmin.xlane.f32.xlu0 %v683
        %v685 = vpop.xlane.xlu0 %684
        %vm686 = vcmp.eq.f32.partialorder %v683, %v685
        %v687 = vsel %vm686, %v682, inf
        %688 = vmin.xlane.f32.xlu0 %v687
        %v689 = vpop.xlane.xlu0 %688
        %v690 = vcvt.f32.s32 %v689
        %v691 = vcvt.f32.s32 %v685
        %v692 = vshll.u32 %v691, 16
        %v693 = vadd.s32 %v692, %v690
        %v694 = vsel %vm393, %v594, 2147483647
        %v695 = vand.u32 %v694, 65535
        %v696 = vshra.s32 %v694, 16
        %v697 = vcvt.s32.f32 %v695
        %v698 = vcvt.s32.f32 %v696
        %699 = vmin.xlane.f32.xlu0 %v698
        %v700 = vpop.xlane.xlu0 %699
        %vm701 = vcmp.eq.f32.partialorder %v698, %v700
        %v702 = vsel %vm701, %v697, inf
        %703 = vmin.xlane.f32.xlu0 %v702
        %v704 = vpop.xlane.xlu0 %703
        %v705 = vcvt.f32.s32 %v704
        %v706 = vcvt.f32.s32 %v700
        %v707 = vshll.u32 %v706, 16
        %v708 = vadd.s32 %v707, %v705
        %v709 = vsel %vm393, %v595, 2147483647
        %v710 = vand.u32 %v709, 65535
        %v711 = vshra.s32 %v709, 16
        %v712 = vcvt.s32.f32 %v710
        %v713 = vcvt.s32.f32 %v711
        %714 = vmin.xlane.f32.xlu0 %v713
        %v715 = vpop.xlane.xlu0 %714
        %vm716 = vcmp.eq.f32.partialorder %v713, %v715
        %v717 = vsel %vm716, %v712, inf
        %718 = vmin.xlane.f32.xlu0 %v717
        %v719 = vpop.xlane.xlu0 %718
        %v720 = vcvt.f32.s32 %v719
        %v721 = vcvt.f32.s32 %v715
        %v722 = vshll.u32 %v721, 16
        %v723 = vadd.s32 %v722, %v720
        %v724 = vsel %vm393, %v596, 2147483647
        %v725 = vand.u32 %v724, 65535
        %v726 = vshra.s32 %v724, 16
        %v727 = vcvt.s32.f32 %v725
        %v728 = vcvt.s32.f32 %v726
        %729 = vmin.xlane.f32.xlu0 %v728
        %v730 = vpop.xlane.xlu0 %729
        %vm731 = vcmp.eq.f32.partialorder %v728, %v730
        %v732 = vsel %vm731, %v727, inf
        %733 = vmin.xlane.f32.xlu0 %v732
        %v734 = vpop.xlane.xlu0 %733
        %v735 = vcvt.f32.s32 %v734
        %v736 = vcvt.f32.s32 %v730
        %v737 = vshll.u32 %v736, 16
        %v738 = vadd.s32 %v737, %v735
        %v739 = vsel %vm393, %v597, 2147483647
        %v740 = vand.u32 %v739, 65535
        %v741 = vshra.s32 %v739, 16
        %v742 = vcvt.s32.f32 %v740
        %v743 = vcvt.s32.f32 %v741
        %744 = vmin.xlane.f32.xlu0 %v743
        %v745 = vpop.xlane.xlu0 %744
        %vm746 = vcmp.eq.f32.partialorder %v743, %v745
        %v747 = vsel %vm746, %v742, inf
        %748 = vmin.xlane.f32.xlu0 %v747
        %v749 = vpop.xlane.xlu0 %748
        %v750 = vcvt.f32.s32 %v749
        %v751 = vcvt.f32.s32 %v745
        %v752 = vshll.u32 %v751, 16
        %v753 = vadd.s32 %v752, %v750
        %v754 = vsel %vm393, %v598, 2147483647
        %v755 = vand.u32 %v754, 65535
        %v756 = vshra.s32 %v754, 16
        %v757 = vcvt.s32.f32 %v755
        %v758 = vcvt.s32.f32 %v756
        %759 = vmin.xlane.f32.xlu0 %v758
        %v760 = vpop.xlane.xlu0 %759
        %vm761 = vcmp.eq.f32.partialorder %v758, %v760
        %v762 = vsel %vm761, %v757, inf
        %763 = vmin.xlane.f32.xlu0 %v762
        %v764 = vpop.xlane.xlu0 %763
        %v765 = vcvt.f32.s32 %v764
        %v766 = vcvt.f32.s32 %v760
        %v767 = vshll.u32 %v766, 16
        %v768 = vadd.s32 %v767, %v765
        %v769 = vsel %vm393, %v599, 2147483647
        %v770 = vand.u32 %v769, 65535
        %v771 = vshra.s32 %v769, 16
        %v772 = vcvt.s32.f32 %v770
        %v773 = vcvt.s32.f32 %v771
        %774 = vmin.xlane.f32.xlu0 %v773
        %v775 = vpop.xlane.xlu0 %774
        %vm776 = vcmp.eq.f32.partialorder %v773, %v775
        %v777 = vsel %vm776, %v772, inf
        %778 = vmin.xlane.f32.xlu0 %v777
        %v779 = vpop.xlane.xlu0 %778
        %v780 = vcvt.f32.s32 %v779
        %v781 = vcvt.f32.s32 %v775
        %v782 = vshll.u32 %v781, 16
        %v783 = vadd.s32 %v782, %v780
        %v784 = vsel %vm393, %v600, 2147483647
        %v785 = vand.u32 %v784, 65535
        %v786 = vshra.s32 %v784, 16
        %v787 = vcvt.s32.f32 %v785
        %v788 = vcvt.s32.f32 %v786
        %789 = vmin.xlane.f32.xlu0 %v788
        %v790 = vpop.xlane.xlu0 %789
        %vm791 = vcmp.eq.f32.partialorder %v788, %v790
        %v792 = vsel %vm791, %v787, inf
        %793 = vmin.xlane.f32.xlu0 %v792
        %v794 = vpop.xlane.xlu0 %793
        %v795 = vcvt.f32.s32 %v794
        %v796 = vcvt.f32.s32 %v790
        %v797 = vshll.u32 %v796, 16
        %v798 = vadd.s32 %v797, %v795
        %v799 = vsel %vm393, %v601, 2147483647
        %v800 = vand.u32 %v799, 65535
        %v801 = vshra.s32 %v799, 16
        %v802 = vcvt.s32.f32 %v800
        %v803 = vcvt.s32.f32 %v801
        %804 = vmin.xlane.f32.xlu0 %v803
        %v805 = vpop.xlane.xlu0 %804
        %vm806 = vcmp.eq.f32.partialorder %v803, %v805
        %v807 = vsel %vm806, %v802, inf
        %808 = vmin.xlane.f32.xlu0 %v807
        %v809 = vpop.xlane.xlu0 %808
        %v810 = vcvt.f32.s32 %v809
        %v811 = vcvt.f32.s32 %v805
        %v812 = vshll.u32 %v811, 16
        %v813 = vadd.s32 %v812, %v810
        %v814 = vsel %vm393, %v602, 2147483647
        %v815 = vand.u32 %v814, 65535
        %v816 = vshra.s32 %v814, 16
        %v817 = vcvt.s32.f32 %v815
        %v818 = vcvt.s32.f32 %v816
        %819 = vmin.xlane.f32.xlu0 %v818
        %v820 = vpop.xlane.xlu0 %819
        %vm821 = vcmp.eq.f32.partialorder %v818, %v820
        %v822 = vsel %vm821, %v817, inf
        %823 = vmin.xlane.f32.xlu0 %v822
        %v824 = vpop.xlane.xlu0 %823
        %v825 = vcvt.f32.s32 %v824
        %v826 = vcvt.f32.s32 %v820
        %v827 = vshll.u32 %v826, 16
        %v828 = vadd.s32 %v827, %v825
        %v829 = vsel %vm393, %v603, 2147483647
        %v830 = vand.u32 %v829, 65535
        %v831 = vshra.s32 %v829, 16
        %v832 = vcvt.s32.f32 %v830
        %v833 = vcvt.s32.f32 %v831
        %834 = vmin.xlane.f32.xlu0 %v833
        %v835 = vpop.xlane.xlu0 %834
        %vm836 = vcmp.eq.f32.partialorder %v833, %v835
        %v837 = vsel %vm836, %v832, inf
        %838 = vmin.xlane.f32.xlu0 %v837
        %v839 = vpop.xlane.xlu0 %838
        %v840 = vcvt.f32.s32 %v839
        %v841 = vcvt.f32.s32 %v835
        %v842 = vshll.u32 %v841, 16
        %v843 = vadd.s32 %v842, %v840
        %v844 = vlog2.pop %v492
        %v845 = vmul.f32 %v844, 0.6931472
        %v846 = vlog2.pop %v495
        %v847 = vmul.f32 %v846, 0.6931472
        %v848 = vlog2.pop %v498
        %v849 = vmul.f32 %v848, 0.6931472
        %v850 = vlog2.pop %v501
        %v851 = vmul.f32 %v850, 0.6931472
        %v852 = vlog2.pop %v504
        %v853 = vmul.f32 %v852, 0.6931472
        %v854 = vlog2.pop %v507
        %v855 = vmul.f32 %v854, 0.6931472
        %v856 = vlog2.pop %v510
        %v857 = vmul.f32 %v856, 0.6931472
        %v858 = vlog2.pop %v513
        %v859 = vmul.f32 %v858, 0.6931472
        %v860 = vlog2.pop %v516
        %v861 = vmul.f32 %v860, 0.6931472
        %v862 = vlog2.pop %v519
        %v863 = vmul.f32 %v862, 0.6931472
        %v864 = vlog2.pop %v522
        %v865 = vmul.f32 %v864, 0.6931472
        %v866 = vlog2.pop %v525
        %v867 = vmul.f32 %v866, 0.6931472
        %v868 = vlog2.pop %v528
        %v869 = vmul.f32 %v868, 0.6931472
        %v870 = vlog2.pop %v531
        %v871 = vmul.f32 %v870, 0.6931472
        %v872 = vlog2.pop %v534
        %v873 = vmul.f32 %v872, 0.6931472
        %v874 = vlog2.pop %v537
        %v875 = vmul.f32 %v874, 0.6931472
        %v876 = vmul.f32 %v554, %v442
        %v877 = vmul.f32 %v555, %v443
        %v878 = vmul.f32 %v556, %v444
        %v879 = vmul.f32 %v557, %v445
        %v880 = vmul.f32 %v558, %v446
        %v881 = vmul.f32 %v559, %v447
        %v882 = vmul.f32 %v560, %v448
        %v883 = vmul.f32 %v561, %v449
        %v884 = vmul.f32 %v562, %v450
        %v885 = vmul.f32 %v563, %v451
        %v886 = vmul.f32 %v564, %v452
        %v887 = vmul.f32 %v565, %v453
        %v888 = vmul.f32 %v566, %v454
        %v889 = vmul.f32 %v567, %v455
        %v890 = vmul.f32 %v568, %v456
        %v891 = vmul.f32 %v569, %v457
        %v892 = vsel %vm393, %v876, 0.0
        %893 = vadd.xlane.f32.xlu0 %v892
        %v894 = vpop.xlane.xlu0 %893
        %v895 = vsel %vm393, %v877, 0.0
        %896 = vadd.xlane.f32.xlu0 %v895
        %v897 = vpop.xlane.xlu0 %896
        %v898 = vsel %vm393, %v878, 0.0
        %899 = vadd.xlane.f32.xlu0 %v898
        %v900 = vpop.xlane.xlu0 %899
        %v901 = vsel %vm393, %v879, 0.0
        %902 = vadd.xlane.f32.xlu0 %v901
        %v903 = vpop.xlane.xlu0 %902
        %v904 = vsel %vm393, %v880, 0.0
        %905 = vadd.xlane.f32.xlu0 %v904
        %v906 = vpop.xlane.xlu0 %905
        %v907 = vsel %vm393, %v881, 0.0
        %908 = vadd.xlane.f32.xlu0 %v907
        %v909 = vpop.xlane.xlu0 %908
        %v910 = vsel %vm393, %v882, 0.0
        %911 = vadd.xlane.f32.xlu0 %v910
        %v912 = vpop.xlane.xlu0 %911
        %v913 = vsel %vm393, %v883, 0.0
        %914 = vadd.xlane.f32.xlu0 %v913
        %v915 = vpop.xlane.xlu0 %914
        %v916 = vsel %vm393, %v884, 0.0
        %917 = vadd.xlane.f32.xlu0 %v916
        %v918 = vpop.xlane.xlu0 %917
        %v919 = vsel %vm393, %v885, 0.0
        %920 = vadd.xlane.f32.xlu0 %v919
        %v921 = vpop.xlane.xlu0 %920
        %v922 = vsel %vm393, %v886, 0.0
        %923 = vadd.xlane.f32.xlu0 %v922
        %v924 = vpop.xlane.xlu0 %923
        %v925 = vsel %vm393, %v887, 0.0
        %926 = vadd.xlane.f32.xlu0 %v925
        %v927 = vpop.xlane.xlu0 %926
        %v928 = vsel %vm393, %v888, 0.0
        %929 = vadd.xlane.f32.xlu0 %v928
        %v930 = vpop.xlane.xlu0 %929
        %v931 = vsel %vm393, %v889, 0.0
        %932 = vadd.xlane.f32.xlu0 %v931
        %v933 = vpop.xlane.xlu0 %932
        %v934 = vsel %vm393, %v890, 0.0
        %935 = vadd.xlane.f32.xlu0 %v934
        %v936 = vpop.xlane.xlu0 %935
        %v937 = vsel %vm393, %v891, 0.0
        %938 = vadd.xlane.f32.xlu0 %v937
        %v939 = vpop.xlane.xlu0 %938
        %v940 = vsub.f32 %v845, %v894
        %v941 = vsub.f32 %v847, %v897
        %v942 = vsub.f32 %v849, %v900
        %v943 = vsub.f32 %v851, %v903
        %v944 = vsub.f32 %v853, %v906
        %v945 = vsub.f32 %v855, %v909
        %v946 = vsub.f32 %v857, %v912
        %v947 = vsub.f32 %v859, %v915
        %v948 = vsub.f32 %v861, %v918
        %v949 = vsub.f32 %v863, %v921
        %v950 = vsub.f32 %v865, %v924
        %v951 = vsub.f32 %v867, %v927
        %v952 = vsub.f32 %v869, %v930
        %v953 = vsub.f32 %v871, %v933
        %v954 = vsub.f32 %v873, %v936
        %v955 = vsub.f32 %v875, %v939
        %956 = vst [vmem:[%s164] sm:$0xff] 0.0
        %957 = vst [vmem:[%s164 + $0x8] sm:$0xff] 0.0
        %958 = vst [vmem:[%s164 + $0x10] sm:$0xff] 0.0
        %959 = vst [vmem:[%s164 + $0x18] sm:$0xff] 0.0
        %960 = vst [vmem:[%s164 + $0x20] sm:$0xff] 0.0
        %961 = vst [vmem:[%s164 + $0x28] sm:$0xff] 0.0
        %962 = vst [vmem:[%s164 + $0x30] sm:$0xff] 0.0
        %963 = vst [vmem:[%s164 + $0x38] sm:$0xff] 0.0
        %964 = vst [vmem:[%s164 + $0x40] sm:$0xff] 0.0
        %965 = vst [vmem:[%s164 + $0x48] sm:$0xff] 0.0
        %966 = vst [vmem:[%s164 + $0x50] sm:$0xff] 0.0
        %967 = vst [vmem:[%s164 + $0x58] sm:$0xff] 0.0
        %968 = vst [vmem:[%s164 + $0x60] sm:$0xff] 0.0
        %969 = vst [vmem:[%s164 + $0x68] sm:$0xff] 0.0
        %970 = vst [vmem:[%s164 + $0x70] sm:$0xff] 0.0
        %971 = vst [vmem:[%s164 + $0x78] sm:$0xff] 0.0
        %972 = vst.msk [vmem:[%s164] sm:$0xff] %vm393, %v554
        %973 = vst.msk [vmem:[%s164 + $0x8] sm:$0xff] %vm393, %v555
        %974 = vst.msk [vmem:[%s164 + $0x10] sm:$0xff] %vm393, %v556
        %975 = vst.msk [vmem:[%s164 + $0x18] sm:$0xff] %vm393, %v557
        %976 = vst.msk [vmem:[%s164 + $0x20] sm:$0xff] %vm393, %v558
        %977 = vst.msk [vmem:[%s164 + $0x28] sm:$0xff] %vm393, %v559
        %978 = vst.msk [vmem:[%s164 + $0x30] sm:$0xff] %vm393, %v560
        %979 = vst.msk [vmem:[%s164 + $0x38] sm:$0xff] %vm393, %v561
        %980 = vst.msk [vmem:[%s164 + $0x40] sm:$0xff] %vm393, %v562
        %981 = vst.msk [vmem:[%s164 + $0x48] sm:$0xff] %vm393, %v563
        %982 = vst.msk [vmem:[%s164 + $0x50] sm:$0xff] %vm393, %v564
        %983 = vst.msk [vmem:[%s164 + $0x58] sm:$0xff] %vm393, %v565
        %984 = vst.msk [vmem:[%s164 + $0x60] sm:$0xff] %vm393, %v566
        %985 = vst.msk [vmem:[%s164 + $0x68] sm:$0xff] %vm393, %v567
        %986 = vst.msk [vmem:[%s164 + $0x70] sm:$0xff] %vm393, %v568
        %987 = vst.msk [vmem:[%s164 + $0x78] sm:$0xff] %vm393, %v569
        %v988 = vcvt.s32.f32 %v618
        %v989 = vcvt.s32.f32 %v633
        %v990 = vcvt.s32.f32 %v648
        %v991 = vcvt.s32.f32 %v663
        %v992 = vcvt.s32.f32 %v678
        %v993 = vcvt.s32.f32 %v693
        %v994 = vcvt.s32.f32 %v708
        %v995 = vcvt.s32.f32 %v723
        %v996 = vcvt.s32.f32 %v738
        %v997 = vcvt.s32.f32 %v753
        %v998 = vcvt.s32.f32 %v768
        %v999 = vcvt.s32.f32 %v783
        %v1000 = vcvt.s32.f32 %v798
        %v1001 = vcvt.s32.f32 %v813
        %v1002 = vcvt.s32.f32 %v828
        %v1003 = vcvt.s32.f32 %v843
        %vm1004 = vcmask 72768
        %1005 = vst.msk [vmem:[%s164] sm:$0xff] %vm1004, %v988
        %1006 = vst.msk [vmem:[%s164 + $0x8] sm:$0xff] %vm1004, %v989
        %1007 = vst.msk [vmem:[%s164 + $0x10] sm:$0xff] %vm1004, %v990
        %1008 = vst.msk [vmem:[%s164 + $0x18] sm:$0xff] %vm1004, %v991
        %1009 = vst.msk [vmem:[%s164 + $0x20] sm:$0xff] %vm1004, %v992
        %1010 = vst.msk [vmem:[%s164 + $0x28] sm:$0xff] %vm1004, %v993
        %1011 = vst.msk [vmem:[%s164 + $0x30] sm:$0xff] %vm1004, %v994
        %1012 = vst.msk [vmem:[%s164 + $0x38] sm:$0xff] %vm1004, %v995
        %1013 = vst.msk [vmem:[%s164 + $0x40] sm:$0xff] %vm1004, %v996
        %1014 = vst.msk [vmem:[%s164 + $0x48] sm:$0xff] %vm1004, %v997
        %1015 = vst.msk [vmem:[%s164 + $0x50] sm:$0xff] %vm1004, %v998
        %1016 = vst.msk [vmem:[%s164 + $0x58] sm:$0xff] %vm1004, %v999
        %1017 = vst.msk [vmem:[%s164 + $0x60] sm:$0xff] %vm1004, %v1000
        %1018 = vst.msk [vmem:[%s164 + $0x68] sm:$0xff] %vm1004, %v1001
        %1019 = vst.msk [vmem:[%s164 + $0x70] sm:$0xff] %vm1004, %v1002
        %1020 = vst.msk [vmem:[%s164 + $0x78] sm:$0xff] %vm1004, %v1003
        %vm1021 = vcmask 80968
        %1022 = vst.msk [vmem:[%s164] sm:$0xff] %vm1021, %v845
        %1023 = vst.msk [vmem:[%s164 + $0x8] sm:$0xff] %vm1021, %v847
        %1024 = vst.msk [vmem:[%s164 + $0x10] sm:$0xff] %vm1021, %v849
        %1025 = vst.msk [vmem:[%s164 + $0x18] sm:$0xff] %vm1021, %v851
        %1026 = vst.msk [vmem:[%s164 + $0x20] sm:$0xff] %vm1021, %v853
        %1027 = vst.msk [vmem:[%s164 + $0x28] sm:$0xff] %vm1021, %v855
        %1028 = vst.msk [vmem:[%s164 + $0x30] sm:$0xff] %vm1021, %v857
        %1029 = vst.msk [vmem:[%s164 + $0x38] sm:$0xff] %vm1021, %v859
        %1030 = vst.msk [vmem:[%s164 + $0x40] sm:$0xff] %vm1021, %v861
        %1031 = vst.msk [vmem:[%s164 + $0x48] sm:$0xff] %vm1021, %v863
        %1032 = vst.msk [vmem:[%s164 + $0x50] sm:$0xff] %vm1021, %v865
        %1033 = vst.msk [vmem:[%s164 + $0x58] sm:$0xff] %vm1021, %v867
        %1034 = vst.msk [vmem:[%s164 + $0x60] sm:$0xff] %vm1021, %v869
        %1035 = vst.msk [vmem:[%s164 + $0x68] sm:$0xff] %vm1021, %v871
        %1036 = vst.msk [vmem:[%s164 + $0x70] sm:$0xff] %vm1021, %v873
        %1037 = vst.msk [vmem:[%s164 + $0x78] sm:$0xff] %vm1021, %v875
        %vm1038 = vcmask 89168
        %1039 = vst.msk [vmem:[%s164] sm:$0xff] %vm1038, %v940
        %1040 = vst.msk [vmem:[%s164 + $0x8] sm:$0xff] %vm1038, %v941
        %1041 = vst.msk [vmem:[%s164 + $0x10] sm:$0xff] %vm1038, %v942
        %1042 = vst.msk [vmem:[%s164 + $0x18] sm:$0xff] %vm1038, %v943
        %1043 = vst.msk [vmem:[%s164 + $0x20] sm:$0xff] %vm1038, %v944
        %1044 = vst.msk [vmem:[%s164 + $0x28] sm:$0xff] %vm1038, %v945
        %1045 = vst.msk [vmem:[%s164 + $0x30] sm:$0xff] %vm1038, %v946
        %1046 = vst.msk [vmem:[%s164 + $0x38] sm:$0xff] %vm1038, %v947
        %1047 = vst.msk [vmem:[%s164 + $0x40] sm:$0xff] %vm1038, %v948
        %1048 = vst.msk [vmem:[%s164 + $0x48] sm:$0xff] %vm1038, %v949
        %1049 = vst.msk [vmem:[%s164 + $0x50] sm:$0xff] %vm1038, %v950
        %1050 = vst.msk [vmem:[%s164 + $0x58] sm:$0xff] %vm1038, %v951
        %1051 = vst.msk [vmem:[%s164 + $0x60] sm:$0xff] %vm1038, %v952
        %1052 = vst.msk [vmem:[%s164 + $0x68] sm:$0xff] %vm1038, %v953
        %1053 = vst.msk [vmem:[%s164 + $0x70] sm:$0xff] %vm1038, %v954
        %1054 = vst.msk [vmem:[%s164 + $0x78] sm:$0xff] %vm1038, %v955
        %s1055 = sand.u32 %s93, 1
        %s1056 = scalar_lea.sflag [#allocation3], %s1055
        %s1057 = sand.u32 %s93, 1
        %s1058 = smul.addr %s1057, 128
        %s1059 = scalar_lea.vmem [#allocation2], %s1058
        // Predicated region
        $region33: #{tpu_custom_call.1} parent=31 // pred_check
          %p1060 = pneg %p103
        $region34: #{tpu_custom_call.1} parent=31 // pred_check_branch
          %1062 = sbr.rel (%p1060) target = $region36
        $region35: #{tpu_custom_call.1} parent=31 // pred_region
          %s1063 = smul.u32 16, %s17
          %s1065 = ssub.s32 2048, 2048
          %1066 = vsyncadd %s1056, %s1065
          %s1067 = smul.addr %s1063, 128
          %s1068 = scalar_lea.hbm %s3, %s1067
          %s1069 = sshll.u32 %s1059, 4
          %s1070 = int_to_ptr.vmem [resolvable:$true] %s1069
          %1075 = dma.vmem_to_hbm [thread:$0]  %s1070, 2048, %s1068, %s1056, 128, 128, 8
        $region36: #{tpu_custom_call.1} parent=31 // pred_fallthru
          _
      $region32: #{tpu_custom_call.1} parent=5 // pred_fallthru
        _
      %p1076 = scmp.le.s32.totalorder 2, %s12
      // Predicated region
      $region37: #{tpu_custom_call.1} parent=5 // pred_check
        %p1077 = pneg %p1076
      $region38: #{tpu_custom_call.1} parent=5 // pred_check_branch
        %1079 = sbr.rel (%p1077) target = $region40
      $region39: #{tpu_custom_call.1} parent=5 // pred_region
        %s1080 = ssub.s32 %s12, 2
        // Predicated region
        $region41: #{tpu_custom_call.1} parent=39 // pred_check
          %p1081 = pneg %p109
        $region42: #{tpu_custom_call.1} parent=39 // pred_check_branch
          %1083 = sbr.rel (%p1081) target = $region44
        $region43: #{tpu_custom_call.1} parent=39 // pred_region
          %s1084 = sand.u32 %s94, 1
          %s1085 = scalar_lea.sflag [#allocation3], %s1084
          %s1086 = sand.u32 %s94, 1
          %s1087 = smul.addr %s1086, 128
          %s1088 = scalar_lea.vmem [#allocation2], %s1087
          %1089 = dma.done %s1085, 2048
        $region44: #{tpu_custom_call.1} parent=39 // pred_fallthru
          _
      $region40: #{tpu_custom_call.1} parent=5 // pred_fallthru
        _
    $region6: #{tpu_custom_call.1} parent=1 // loop_footer
      %s16 = sadd.s32 1, %s12
    $region7: #{tpu_custom_call.1} parent=1 // loop_footer_branch
      %11 = sbr.rel target = $region3
    $region8: #{tpu_custom_call.1} parent=1 // loop_exit
      _
    %1090 = vsyncpa [#allocation3], 1
    %s1091 = scalar_lea.sflag [#allocation3], 1
    %1092 = vsyncpa %s1091, 1

</llo_original>
